<compile_context>
chip_gen: v7x
topology: tpu7x:2x2x1
jax: 0.10.0
libtpu: 0.0.40
codegen_flags: <defaults>
</compile_context>

<pallas_src>
import jax
import jax.numpy as jnp
from jax.experimental import pallas as pl
from jax.experimental.pallas import tpu as pltpu


# ----------------------------------------------------------------------------
# kernel
# ----------------------------------------------------------------------------
def _make_ce_kernel(BN, HW, t_bn, t_hw, T_per_core, rows_covered, cols_covered):
    """Cross-entropy with ignore_index=-1 over (t_bn, D, t_hw) logit tiles."""
    need_row_mask = rows_covered > BN   # some block rows fall past BN
    need_col_mask = cols_covered > HW   # some block lanes fall past HW

    def kernel(logits_ref, labels_ref, sum_ref, cnt_ref):
        c = pl.program_id(0)            # core / partial-accumulator index
        t = pl.program_id(1)            # camera-slab tile index within core
        h = pl.program_id(2)            # pixel (lane) tile index

        @pl.when(jnp.logical_and(t == 0, h == 0))
        def _():
            sum_ref[...] = jnp.zeros_like(sum_ref)
            cnt_ref[...] = jnp.zeros_like(cnt_ref)

        x = logits_ref[...].astype(jnp.float32)        # (t_bn, D, t_hw)
        lbl = labels_ref[...][:, None, :]              # (t_bn, 1, t_hw) int32
        D = x.shape[1]

        # numerically stable log-sum-exp over the depth-bin (sublane) axis
        m = jnp.max(x, axis=1, keepdims=True)          # (t_bn, 1, t_hw)
        lse = jnp.log(jnp.sum(jnp.exp(x - m), axis=1, keepdims=True)) + m

        # logit at the label bin: (1, D, 1) iota broadcast-compared along D
        d_iota = jax.lax.broadcasted_iota(jnp.int32, (1, D, 1), 1)
        sel = jnp.sum(jnp.where(d_iota == lbl, x, 0.0), axis=1, keepdims=True)

        valid = lbl >= 0                               # (t_bn, 1, t_hw)
        if need_row_mask:                              # partial tail BN tiles
            g = c * T_per_core + t                     # UNclamped tile id
            row = g * t_bn + jax.lax.broadcasted_iota(jnp.int32, (t_bn, 1, 1), 0)
            valid = jnp.logical_and(valid, row < BN)
        if need_col_mask:                              # partial tail HW tiles
            col = h * t_hw + jax.lax.broadcasted_iota(jnp.int32, (1, 1, t_hw), 2)
            valid = jnp.logical_and(valid, col < HW)

        # SELECT (not multiply-by-zero) so garbage tail bytes can never
        # inject NaN/Inf into the running sum.
        loss = jnp.where(valid, lse - sel, 0.0)        # (t_bn, 1, t_hw)

        loss_p = jnp.sum(jnp.sum(loss, axis=2, keepdims=True),
                         axis=0, keepdims=True)        # (1, 1, 1)
        vcnt_p = jnp.sum(jnp.sum(valid.astype(jnp.float32), axis=2, keepdims=True),
                         axis=0, keepdims=True)        # (1, 1, 1)
        sum_ref[...] = sum_ref[...] + loss_p
        cnt_ref[...] = cnt_ref[...] + vcnt_p

    return kernel


# ----------------------------------------------------------------------------
# host-side helpers
# ----------------------------------------------------------------------------
def _num_tensorcores():
    """Best-effort count of TensorCores one pallas_call can shard across.

    2 TCs: v4 / v5p (megacore) and v7x.  1 TC: v5e / v6e (and unknowns).
    Any value is still correct (the kernel masks); it only affects megacore
    sharding of the leading grid axis.
    """
    try:
        kind = str(jax.devices()[0].device_kind).lower()
    except Exception:
        return 1
    if "lite" in kind or "v5e" in kind or "v6e" in kind:
        return 1
    if "v4" in kind or "v5p" in kind or "v5" in kind or "7" in kind:
        return 2
    return 1


def _choose_tiles(BN, D, HW, itemsize, budget):
    """Pick (t_bn, t_hw) block dims for (BN, D, HW) logits / (BN, HW) labels.

    D (the per-pixel reduction axis) always stays whole.  The label block
    (t_bn, t_hw) must keep t_bn % 8 == 0 or t_bn == BN, and t_hw % 128 == 0
    or t_hw == HW (the (8,128) block-shape rule).
    """
    slab = D * HW * itemsize                     # one camera slab
    t_bn_full = budget // max(slab, 1)
    if t_bn_full >= BN:
        return BN, HW
    if t_bn_full >= 8:
        return (t_bn_full // 8) * 8, HW
    # fewer than 8 whole slabs fit the budget -> also tile the pixel (lane)
    # axis; keeps double-buffered blocks pipeline-sized on v7x (64 MiB VMEM/TC)
    t_bn = BN if BN < 8 else 8
    t_hw = (budget // max(t_bn * D * itemsize, 1)) // 128 * 128
    t_hw = max(128, t_hw)
    t_hw = min(t_hw, HW)
    return t_bn, t_hw


def cross_entropy_ignore(logits3d, labels2d, *, target_block_bytes=4 << 20):
    """Mean cross-entropy with ignore_index=-1.

    logits3d: (BN, D, HW) — depth bins on sublanes, pixels on the lane axis.
    labels2d: (BN, HW) int32, -1 = ignore.
    """
    BN, D, HW = logits3d.shape
    assert labels2d.shape == (BN, HW)
    assert labels2d.dtype == jnp.int32

    itemsize = jnp.dtype(logits3d.dtype).itemsize
    t_bn, t_hw = _choose_tiles(BN, D, HW, itemsize, target_block_bytes)

    T_total = -(-BN // t_bn)                 # ceil(BN / t_bn)
    T_hw = -(-HW // t_hw)                    # ceil(HW / t_hw)
    n_cores = max(1, min(_num_tensorcores(), T_total))
    T_per_core = -(-T_total // n_cores)      # ceil(T_total / n_cores)

    if n_cores == 1:
        # no clamp, no duplicated masked tail tile on single-TC chips
        def logits_idx(c, t, h):
            return (t, 0, h)

        def labels_idx(c, t, h):
            return (t, h)
    else:
        def logits_idx(c, t, h):
            return (jnp.minimum(c * T_per_core + t, T_total - 1), 0, h)

        def labels_idx(c, t, h):
            return (jnp.minimum(c * T_per_core + t, T_total - 1), h)

    # scoped-VMEM cap: double-buffered inputs + a few block-sized f32
    # temporaries for the elementwise chain (upcast, exp, one-hot select).
    logit_blk = t_bn * D * t_hw * itemsize
    label_blk = t_bn * t_hw * 4
    f32_blk = t_bn * D * t_hw * 4
    vmem_limit = int(min(56 * 1024 * 1024,
                         max(32 * 1024 * 1024,
                             2 * (logit_blk + label_blk) + 6 * f32_blk)))

    kernel = _make_ce_kernel(BN, HW, t_bn, t_hw, T_per_core,
                             n_cores * T_per_core * t_bn, T_hw * t_hw)

    sums, cnts = pl.pallas_call(
        kernel,
        out_shape=(jax.ShapeDtypeStruct((n_cores, 1, 1), jnp.float32),
                   jax.ShapeDtypeStruct((n_cores, 1, 1), jnp.float32)),
        grid_spec=pltpu.PrefetchScalarGridSpec(
            num_scalar_prefetch=0,
            grid=(n_cores, T_per_core, T_hw),
            in_specs=[pl.BlockSpec((t_bn, D, t_hw), logits_idx),
                      pl.BlockSpec((t_bn, t_hw), labels_idx)],
            out_specs=(pl.BlockSpec((1, 1, 1), lambda c, t, h: (c, 0, 0)),
                       pl.BlockSpec((1, 1, 1), lambda c, t, h: (c, 0, 0))),
        ),
        compiler_params=pltpu.CompilerParams(
            dimension_semantics=("parallel", "arbitrary", "arbitrary"),
            vmem_limit_bytes=vmem_limit),
    )(logits3d, labels2d)

    total = jnp.sum(sums)
    count = jnp.sum(cnts)
    # all-ignored corner case returns 0 instead of the reference's NaN
    return total / jnp.maximum(count, 1.0)


# ----------------------------------------------------------------------------
# module wrapper
# ----------------------------------------------------------------------------
class DepthLossPallas:
    """JAX/Pallas port of DepthLoss (no learnable parameters)."""

    def __init__(self, d_range=(2.0, 66.0, 0.5), down_sample_factor=4,
                 compute_dtype=jnp.bfloat16):
        self.d_range = d_range
        self.down_sample_factor = down_sample_factor
        self.depth_channels = round((d_range[1] - d_range[0]) / d_range[2])
        # dtype the logits are streamed to the kernel in; bf16 halves the
        # dominant HBM read while all math stays f32 in-vreg.  Best case the
        # upstream depth head already emits bf16 so the cast is a no-op.
        self.compute_dtype = compute_dtype

    def get_depth_label(self, gt_depths):
        # TODO(synk): get_depth_label source was not provided; this follows the
        # standard BEVDepth convention (min-pool each down_sample block, treat
        # zero / out-of-range depths as ignore label -1).
        ds = self.down_sample_factor
        lo, hi, step = self.d_range
        B, N, H, W = gt_depths.shape
        g = gt_depths.reshape(B * N, H // ds, ds, W // ds, ds)
        g = jnp.where(g > 0.0, g, jnp.float32(1e5))
        g = jnp.min(g, axis=(2, 4))                       # (B*N, H//ds, W//ds)
        label = jnp.floor((g - lo) / step).astype(jnp.int32)
        label = jnp.clip(label, 0, self.depth_channels - 1)
        valid = (g >= lo) & (g < hi)
        return jnp.where(valid, label, -1)                # (B*N, H//ds, W//ds)

    def __call__(self, pred_depths, gt_depths):
        # pred_depths: (B, N, D, Hf, Wf); gt_depths: (B, N, Hf*ds, Wf*ds)
        B, N, D, Hf, Wf = pred_depths.shape
        assert D == self.depth_channels
        if self.compute_dtype is not None and pred_depths.dtype != self.compute_dtype:
            pred_depths = pred_depths.astype(self.compute_dtype)
        # Free reshape (no transpose): depth bins stay contiguous -> sublanes,
        # Hf*Wf pixels become the 128-lane axis.
        logits3d = pred_depths.reshape(B * N, D, Hf * Wf)
        labels2d = self.get_depth_label(gt_depths).reshape(B * N, Hf * Wf)
        # TODO(synk): the ds x ds min-pool + binning above could be fused into
        # the same Pallas pass to save one labels HBM round trip (~5-10%).
        return cross_entropy_ignore(logits3d, labels2d)


# ----------------------------------------------------------------------------
# self-check
# ----------------------------------------------------------------------------
if __name__ == "__main__":
    d_range = (2.0, 66.0, 0.5)          # -> depth_channels = 128
    ds = 4
    B, N, Hf, Wf = 2, 2, 8, 8
    D = round((d_range[1] - d_range[0]) / d_range[2])

    key = jax.random.PRNGKey(0)
    k1, k2, k3 = jax.random.split(key, 3)
    # bf16 logits: exactly what the kernel streams (wrapper cast is a no-op)
    pred = jax.random.normal(k1, (B, N, D, Hf, Wf), jnp.float32).astype(jnp.bfloat16)
    gt = jax.random.uniform(k2, (B, N, Hf * ds, Wf * ds), jnp.float32,
                            minval=0.0, maxval=70.0)
    # sprinkle invalid (zero-depth) pixels like a real sparse depth map
    drop = jax.random.bernoulli(k3, 0.3, gt.shape)
    gt = jnp.where(drop, 0.0, gt)

    loss_fn = DepthLossPallas(d_range, ds)
    loss = jax.block_until_ready(loss_fn(pred, gt))

    # plain-JAX reference (mirrors the PyTorch permute+reshape path) computed
    # on the same bf16 logit values upcast to f32
    logits = jnp.transpose(pred.astype(jnp.float32), (0, 1, 3, 4, 2)).reshape(-1, D)
    labels = loss_fn.get_depth_label(gt).reshape(-1)
    logp = jax.nn.log_softmax(logits, axis=-1)
    valid = labels >= 0
    sel = jnp.take_along_axis(logp, jnp.maximum(labels, 0)[:, None], axis=-1)[:, 0]
    ref = -jnp.sum(jnp.where(valid, sel, 0.0)) / jnp.sum(valid)
    assert jnp.allclose(loss, ref, rtol=1e-4, atol=1e-4), (loss, ref)

    print("KERNEL_OK")
</pallas_src>

<mosaic_0001>
module attributes {stable_mosaic.version = 11 : i64} {
  func.func @kernel(%arg0: i32, %arg1: i32, %arg2: i32, %arg3: memref<4x128x64xbf16, #tpu.memory_space<vmem>>, %arg4: memref<4x64xi32, #tpu.memory_space<vmem>>, %arg5: memref<1x1x1xf32, #tpu.memory_space<vmem>>, %arg6: memref<1x1x1xf32, #tpu.memory_space<vmem>>) attributes {dimension_semantics = [#tpu.dimension_semantics<parallel>, #tpu.dimension_semantics<arbitrary>, #tpu.dimension_semantics<arbitrary>], iteration_bounds = array<i64: 1, 1, 1>, scalar_prefetch = 0 : i64, scratch_operands = 0 : i64, tpu.core_type = #tpu.core_type<tc>, window_params = [{transform_indices = @transform_0, window_bounds = array<i64: 4, 128, 64>}, {transform_indices = @transform_1, window_bounds = array<i64: 4, 64>}, {transform_indices = @transform_2, window_bounds = array<i64: 1, 1, 1>}, {transform_indices = @transform_3, window_bounds = array<i64: 1, 1, 1>}]} {
    %c0_i32 = arith.constant 0 : i32
    %0 = arith.cmpi eq, %arg1, %c0_i32 : i32
    %c0_i32_0 = arith.constant 0 : i32
    %1 = arith.cmpi eq, %arg2, %c0_i32_0 : i32
    %2 = arith.andi %0, %1 : i1
    %3 = arith.extui %2 : i1 to i32
    %c0_i32_1 = arith.constant 0 : i32
    %4 = arith.cmpi ne, %3, %c0_i32_1 : i32
    scf.if %4 {
      %cst_27 = arith.constant 0.000000e+00 : f32
      %47 = vector.broadcast %cst_27 : f32 to vector<1x1x1xf32>
      %c0_28 = arith.constant 0 : index
      %c0_29 = arith.constant 0 : index
      %c0_30 = arith.constant 0 : index
      %48 = vector.load %arg5[%c0_28, %c0_29, %c0_30] : memref<1x1x1xf32, #tpu.memory_space<vmem>>, vector<1x1x1xf32>
      tpu.vector_store %arg5[%c0_28, %c0_29, %c0_30], %47 {strides = array<i32>} : memref<1x1x1xf32, #tpu.memory_space<vmem>>, vector<1x1x1xf32>,
      %cst_31 = arith.constant 0.000000e+00 : f32
      %49 = vector.broadcast %cst_31 : f32 to vector<1x1x1xf32>
      %c0_32 = arith.constant 0 : index
      %c0_33 = arith.constant 0 : index
      %c0_34 = arith.constant 0 : index
      %50 = vector.load %arg6[%c0_32, %c0_33, %c0_34] : memref<1x1x1xf32, #tpu.memory_space<vmem>>, vector<1x1x1xf32>
      tpu.vector_store %arg6[%c0_32, %c0_33, %c0_34], %49 {strides = array<i32>} : memref<1x1x1xf32, #tpu.memory_space<vmem>>, vector<1x1x1xf32>,
    } else {
    }
    %c0 = arith.constant 0 : index
    %c0_2 = arith.constant 0 : index
    %c0_3 = arith.constant 0 : index
    %5 = vector.load %arg3[%c0, %c0_2, %c0_3] : memref<4x128x64xbf16, #tpu.memory_space<vmem>>, vector<4x128x64xbf16>
    %6 = arith.extf %5 : vector<4x128x64xbf16> to vector<4x128x64xf32>
    %c0_4 = arith.constant 0 : index
    %c0_5 = arith.constant 0 : index
    %7 = vector.load %arg4[%c0_4, %c0_5] : memref<4x64xi32, #tpu.memory_space<vmem>>, vector<4x64xi32>
    %8 = vector.shape_cast %7 : vector<4x64xi32> to vector<4x1x64xi32>
    %cst = arith.constant dense<0xFF800000> : vector<4x64xf32>
    %9 = vector.multi_reduction <maximumf>, %6, %cst [1] : vector<4x128x64xf32> to vector<4x64xf32>
    %10 = vector.shape_cast %9 : vector<4x64xf32> to vector<4x1x64xf32>
    %11 = vector.broadcast %10 : vector<4x1x64xf32> to vector<4x128x64xf32>
    %12 = arith.subf %6, %11 : vector<4x128x64xf32>
    %13 = math.exp %12 : vector<4x128x64xf32>
    %cst_6 = arith.constant dense<0.000000e+00> : vector<4x64xf32>
    %14 = vector.multi_reduction <add>, %13, %cst_6 [1] : vector<4x128x64xf32> to vector<4x64xf32>
    %15 = vector.shape_cast %14 : vector<4x64xf32> to vector<4x1x64xf32>
    %16 = math.log %15 : vector<4x1x64xf32>
    %17 = arith.addf %16, %10 : vector<4x1x64xf32>
    %18 = tpu.iota {dimensions = array<i32: 1>} : vector<1x128x1xi32>
    %19 = vector.broadcast %18 : vector<1x128x1xi32> to vector<4x128x64xi32>
    %20 = vector.broadcast %8 : vector<4x1x64xi32> to vector<4x128x64xi32>
    %21 = arith.cmpi eq, %19, %20 : vector<4x128x64xi32>
    %cst_7 = arith.constant 0.000000e+00 : f32
    %22 = vector.broadcast %cst_7 : f32 to vector<4x128x64xf32>
    %23 = arith.select %21, %6, %22 : vector<4x128x64xi1>, vector<4x128x64xf32>
    %cst_8 = arith.constant dense<0.000000e+00> : vector<4x64xf32>
    %24 = vector.multi_reduction <add>, %23, %cst_8 [1] : vector<4x128x64xf32> to vector<4x64xf32>
    %25 = vector.shape_cast %24 : vector<4x64xf32> to vector<4x1x64xf32>
    %c0_i32_9 = arith.constant 0 : i32
    %26 = vector.broadcast %c0_i32_9 : i32 to vector<4x1x64xi32>
    %27 = arith.cmpi sge, %8, %26 : vector<4x1x64xi32>
    %28 = arith.subf %17, %25 : vector<4x1x64xf32>
    %cst_10 = arith.constant 0.000000e+00 : f32
    %29 = vector.broadcast %cst_10 : f32 to vector<4x1x64xf32>
    %30 = arith.select %27, %28, %29 : vector<4x1x64xi1>, vector<4x1x64xf32>
    %cst_11 = arith.constant dense<0.000000e+00> : vector<4x1xf32>
    %31 = vector.multi_reduction <add>, %30, %cst_11 [2] : vector<4x1x64xf32> to vector<4x1xf32>
    %32 = vector.shape_cast %31 : vector<4x1xf32> to vector<4x1x1xf32>
    %cst_12 = arith.constant dense<0.000000e+00> : vector<1x1xf32>
    %33 = vector.multi_reduction <add>, %32, %cst_12 [0] : vector<4x1x1xf32> to vector<1x1xf32>
    %34 = vector.shape_cast %33 : vector<1x1xf32> to vector<1x1x1xf32>
    %35 = arith.extui %27 : vector<4x1x64xi1> to vector<4x1x64xi32>
    %36 = arith.sitofp %35 : vector<4x1x64xi32> to vector<4x1x64xf32>
    %cst_13 = arith.constant dense<0.000000e+00> : vector<4x1xf32>
    %37 = vector.multi_reduction <add>, %36, %cst_13 [2] : vector<4x1x64xf32> to vector<4x1xf32>
    %38 = vector.shape_cast %37 : vector<4x1xf32> to vector<4x1x1xf32>
    %cst_14 = arith.constant dense<0.000000e+00> : vector<1x1xf32>
    %39 = vector.multi_reduction <add>, %38, %cst_14 [0] : vector<4x1x1xf32> to vector<1x1xf32>
    %40 = vector.shape_cast %39 : vector<1x1xf32> to vector<1x1x1xf32>
    %c0_15 = arith.constant 0 : index
    %c0_16 = arith.constant 0 : index
    %c0_17 = arith.constant 0 : index
    %41 = vector.load %arg5[%c0_15, %c0_16, %c0_17] : memref<1x1x1xf32, #tpu.memory_space<vmem>>, vector<1x1x1xf32>
    %42 = arith.addf %41, %34 : vector<1x1x1xf32>
    %c0_18 = arith.constant 0 : index
    %c0_19 = arith.constant 0 : index
    %c0_20 = arith.constant 0 : index
    %43 = vector.load %arg5[%c0_18, %c0_19, %c0_20] : memref<1x1x1xf32, #tpu.memory_space<vmem>>, vector<1x1x1xf32>
    tpu.vector_store %arg5[%c0_18, %c0_19, %c0_20], %42 {strides = array<i32>} : memref<1x1x1xf32, #tpu.memory_space<vmem>>, vector<1x1x1xf32>,
    %c0_21 = arith.constant 0 : index
    %c0_22 = arith.constant 0 : index
    %c0_23 = arith.constant 0 : index
    %44 = vector.load %arg6[%c0_21, %c0_22, %c0_23] : memref<1x1x1xf32, #tpu.memory_space<vmem>>, vector<1x1x1xf32>
    %45 = arith.addf %44, %40 : vector<1x1x1xf32>
    %c0_24 = arith.constant 0 : index
    %c0_25 = arith.constant 0 : index
    %c0_26 = arith.constant 0 : index
    %46 = vector.load %arg6[%c0_24, %c0_25, %c0_26] : memref<1x1x1xf32, #tpu.memory_space<vmem>>, vector<1x1x1xf32>
    tpu.vector_store %arg6[%c0_24, %c0_25, %c0_26], %45 {strides = array<i32>} : memref<1x1x1xf32, #tpu.memory_space<vmem>>, vector<1x1x1xf32>,
    return
  }
  func.func @transform_0(%arg0: i32, %arg1: i32, %arg2: i32) -> (i32, i32, i32) {
    %c0_i32 = arith.constant 0 : i32
    %c0_i32_0 = arith.constant 0 : i32
    return %arg1, %c0_i32, %arg2 : i32, i32, i32
  }
  func.func @transform_1(%arg0: i32, %arg1: i32, %arg2: i32) -> (i32, i32) {
    %c0_i32 = arith.constant 0 : i32
    return %arg1, %arg2 : i32, i32
  }
  func.func @transform_2(%arg0: i32, %arg1: i32, %arg2: i32) -> (i32, i32, i32) {
    %c0_i32 = arith.constant 0 : i32
    %c0_i32_0 = arith.constant 0 : i32
    %c0_i32_1 = arith.constant 0 : i32
    return %arg0, %c0_i32, %c0_i32_0 : i32, i32, i32
  }
  func.func @transform_3(%arg0: i32, %arg1: i32, %arg2: i32) -> (i32, i32, i32) {
    %c0_i32 = arith.constant 0 : i32
    %c0_i32_0 = arith.constant 0 : i32
    %c0_i32_1 = arith.constant 0 : i32
    return %arg0, %c0_i32, %c0_i32_0 : i32, i32, i32
  }
}

</mosaic_0001>

<llo_original>
// kernel: tpu_custom_call.1
$region0: #{tpu_custom_call.1}
  #allocation0 [shape = 'u32[]', space=smem, size = 0x4, offset = 0x4, fixed_abs, tag = 'smem constant byte address 0x4 - core index']
  #allocation1 [shape = 'u32[144,128]{1,0:T(1,128)}', space=vmem, size = 0x12000, scoped, tag = 'internal scratch']
  %s0 = inlined_call_operand.vmem [shape: bf16[4,128,64], index: 0, kind: input, shape index: {}]
  %s1 = inlined_call_operand.vmem [shape: s32[4,64], index: 1, kind: input, shape index: {}]
  %s2 = inlined_call_operand.hbm [shape: f32[1,1,1], index: 2, kind: output, shape index: {0}]
  %s3 = inlined_call_operand.hbm [shape: f32[1,1,1], index: 3, kind: output, shape index: {1}]
  %4 = xla_tuple %s2, %s3
  %s5 = sld [smem:[#allocation0]]
  $region30: #{tpu_custom_call.1} parent=0
    _
  %s7 = ssub.s32 1, %s5
  %s8 = scalar_select 0, %s7, %s5
  $region1: #{tpu_custom_call.1} parent=0
    #allocation2 [shape = 'u8[512]{0}', space=vmem, size = 0x400, scoped, tag = 'output window, operand 0, single buffered']
    #allocation3 [shape = 's32[1]{0}', space=sflag, size = 0x4, scoped, tag = 'scoped memory for tpu_custom_call.1']
    #allocation4 [shape = 'u8[512]{0}', space=vmem, size = 0x400, scoped, tag = 'output window, operand 1, single buffered']
    #allocation5 [shape = 's32[1]{0}', space=sflag, size = 0x4, scoped, tag = 'scoped memory for tpu_custom_call.1']
    %9 = vsyncpa [#allocation3], 0
    %10 = vsyncpa [#allocation5], 0
    // Predicated region
    $region2: #{tpu_custom_call.1} parent=1 // pred_check
      _
    $region3: #{tpu_custom_call.1} parent=1 // pred_check_branch
      %12 = sbr.rel (0) target = $region5
    $region4: #{tpu_custom_call.1} parent=1 // pred_region
      _
    $region5: #{tpu_custom_call.1} parent=1 // pred_fallthru
      _
    // Predicated region
    $region6: #{tpu_custom_call.1} parent=1 // pred_check
      _
    $region7: #{tpu_custom_call.1} parent=1 // pred_check_branch
      %14 = sbr.rel (0) target = $region9
    $region8: #{tpu_custom_call.1} parent=1 // pred_region
      _
    $region9: #{tpu_custom_call.1} parent=1 // pred_fallthru
      _
    %p15 = scmp.eq.s32.totalorder 0, 0
    %p16 = scmp.eq.s32.totalorder 0, 0
    %p17 = pnand %p15, %p16
    %p18 = pneg %p17
    // Predicated region
    $region10: #{tpu_custom_call.1} parent=1 // pred_check
      _
    $region11: #{tpu_custom_call.1} parent=1 // pred_check_branch
      %20 = sbr.rel (%p17) target = $region13
    $region12: #{tpu_custom_call.1} parent=1 // pred_region
      %vm21 = vcmask 0
      %22 = vst.msk [vmem:[#allocation2] sm:$0x1] %vm21, 0.0
      %23 = vst.msk [vmem:[#allocation4] sm:$0x1] %vm21, 0.0
    $region13: #{tpu_custom_call.1} parent=1 // pred_fallthru
      _
    %v24 = vld [vmem:[%s0] sm:$0xf]
    %v25 = vld [vmem:[%s0 + $0x4] sm:$0xf]
    %v26 = vld [vmem:[%s0 + $0x8] sm:$0xf]
    %v27 = vld [vmem:[%s0 + $0xc] sm:$0xf]
    %v28 = vld [vmem:[%s0 + $0x10] sm:$0xf]
    %v29 = vld [vmem:[%s0 + $0x14] sm:$0xf]
    %v30 = vld [vmem:[%s0 + $0x18] sm:$0xf]
    %v31 = vld [vmem:[%s0 + $0x1c] sm:$0xf]
    %v32 = vld [vmem:[%s0 + $0x20] sm:$0xf]
    %v33 = vld [vmem:[%s0 + $0x24] sm:$0xf]
    %v34 = vld [vmem:[%s0 + $0x28] sm:$0xf]
    %v35 = vld [vmem:[%s0 + $0x2c] sm:$0xf]
    %v36 = vld [vmem:[%s0 + $0x30] sm:$0xf]
    %v37 = vld [vmem:[%s0 + $0x34] sm:$0xf]
    %v38 = vld [vmem:[%s0 + $0x38] sm:$0xf]
    %v39 = vld [vmem:[%s0 + $0x3c] sm:$0xf]
    %v40 = vld [vmem:[%s0 + $0x40] sm:$0xf]
    %v41 = vld [vmem:[%s0 + $0x44] sm:$0xf]
    %v42 = vld [vmem:[%s0 + $0x48] sm:$0xf]
    %v43 = vld [vmem:[%s0 + $0x4c] sm:$0xf]
    %v44 = vld [vmem:[%s0 + $0x50] sm:$0xf]
    %v45 = vld [vmem:[%s0 + $0x54] sm:$0xf]
    %v46 = vld [vmem:[%s0 + $0x58] sm:$0xf]
    %v47 = vld [vmem:[%s0 + $0x5c] sm:$0xf]
    %v48 = vld [vmem:[%s0 + $0x60] sm:$0xf]
    %v49 = vld [vmem:[%s0 + $0x64] sm:$0xf]
    %v50 = vld [vmem:[%s0 + $0x68] sm:$0xf]
    %v51 = vld [vmem:[%s0 + $0x6c] sm:$0xf]
    %v52 = vld [vmem:[%s0 + $0x70] sm:$0xf]
    %v53 = vld [vmem:[%s0 + $0x74] sm:$0xf]
    %v54 = vld [vmem:[%s0 + $0x78] sm:$0xf]
    %v55 = vld [vmem:[%s0 + $0x7c] sm:$0xf]
    %v56 = vld [vmem:[%s0 + $0x80] sm:$0xf]
    %v57 = vld [vmem:[%s0 + $0x84] sm:$0xf]
    %v58 = vld [vmem:[%s0 + $0x88] sm:$0xf]
    %v59 = vld [vmem:[%s0 + $0x8c] sm:$0xf]
    %v60 = vld [vmem:[%s0 + $0x90] sm:$0xf]
    %v61 = vld [vmem:[%s0 + $0x94] sm:$0xf]
    %v62 = vld [vmem:[%s0 + $0x98] sm:$0xf]
    %v63 = vld [vmem:[%s0 + $0x9c] sm:$0xf]
    %v64 = vld [vmem:[%s0 + $0xa0] sm:$0xf]
    %v65 = vld [vmem:[%s0 + $0xa4] sm:$0xf]
    %v66 = vld [vmem:[%s0 + $0xa8] sm:$0xf]
    %v67 = vld [vmem:[%s0 + $0xac] sm:$0xf]
    %v68 = vld [vmem:[%s0 + $0xb0] sm:$0xf]
    %v69 = vld [vmem:[%s0 + $0xb4] sm:$0xf]
    %v70 = vld [vmem:[%s0 + $0xb8] sm:$0xf]
    %v71 = vld [vmem:[%s0 + $0xbc] sm:$0xf]
    %v72 = vld [vmem:[%s0 + $0xc0] sm:$0xf]
    %v73 = vld [vmem:[%s0 + $0xc4] sm:$0xf]
    %v74 = vld [vmem:[%s0 + $0xc8] sm:$0xf]
    %v75 = vld [vmem:[%s0 + $0xcc] sm:$0xf]
    %v76 = vld [vmem:[%s0 + $0xd0] sm:$0xf]
    %v77 = vld [vmem:[%s0 + $0xd4] sm:$0xf]
    %v78 = vld [vmem:[%s0 + $0xd8] sm:$0xf]
    %v79 = vld [vmem:[%s0 + $0xdc] sm:$0xf]
    %v80 = vld [vmem:[%s0 + $0xe0] sm:$0xf]
    %v81 = vld [vmem:[%s0 + $0xe4] sm:$0xf]
    %v82 = vld [vmem:[%s0 + $0xe8] sm:$0xf]
    %v83 = vld [vmem:[%s0 + $0xec] sm:$0xf]
    %v84 = vld [vmem:[%s0 + $0xf0] sm:$0xf]
    %v85 = vld [vmem:[%s0 + $0xf4] sm:$0xf]
    %v86 = vld [vmem:[%s0 + $0xf8] sm:$0xf]
    %v87 = vld [vmem:[%s0 + $0xfc] sm:$0xf]
    %v88 = vunpack.c.l.bf16 %v24
    %v89 = vunpack.c.l.bf16 %v25
    %v90 = vunpack.c.l.bf16 %v26
    %v91 = vunpack.c.l.bf16 %v27
    %v92 = vunpack.c.l.bf16 %v28
    %v93 = vunpack.c.l.bf16 %v29
    %v94 = vunpack.c.l.bf16 %v30
    %v95 = vunpack.c.l.bf16 %v31
    %v96 = vunpack.c.l.bf16 %v32
    %v97 = vunpack.c.l.bf16 %v33
    %v98 = vunpack.c.l.bf16 %v34
    %v99 = vunpack.c.l.bf16 %v35
    %v100 = vunpack.c.l.bf16 %v36
    %v101 = vunpack.c.l.bf16 %v37
    %v102 = vunpack.c.l.bf16 %v38
    %v103 = vunpack.c.l.bf16 %v39
    %v104 = vunpack.c.l.bf16 %v40
    %v105 = vunpack.c.l.bf16 %v41
    %v106 = vunpack.c.l.bf16 %v42
    %v107 = vunpack.c.l.bf16 %v43
    %v108 = vunpack.c.l.bf16 %v44
    %v109 = vunpack.c.l.bf16 %v45
    %v110 = vunpack.c.l.bf16 %v46
    %v111 = vunpack.c.l.bf16 %v47
    %v112 = vunpack.c.l.bf16 %v48
    %v113 = vunpack.c.l.bf16 %v49
    %v114 = vunpack.c.l.bf16 %v50
    %v115 = vunpack.c.l.bf16 %v51
    %v116 = vunpack.c.l.bf16 %v52
    %v117 = vunpack.c.l.bf16 %v53
    %v118 = vunpack.c.l.bf16 %v54
    %v119 = vunpack.c.l.bf16 %v55
    %v120 = vunpack.c.l.bf16 %v56
    %v121 = vunpack.c.l.bf16 %v57
    %v122 = vunpack.c.l.bf16 %v58
    %v123 = vunpack.c.l.bf16 %v59
    %v124 = vunpack.c.l.bf16 %v60
    %v125 = vunpack.c.l.bf16 %v61
    %v126 = vunpack.c.l.bf16 %v62
    %v127 = vunpack.c.l.bf16 %v63
    %v128 = vunpack.c.l.bf16 %v64
    %v129 = vunpack.c.l.bf16 %v65
    %v130 = vunpack.c.l.bf16 %v66
    %v131 = vunpack.c.l.bf16 %v67
    %v132 = vunpack.c.l.bf16 %v68
    %v133 = vunpack.c.l.bf16 %v69
    %v134 = vunpack.c.l.bf16 %v70
    %v135 = vunpack.c.l.bf16 %v71
    %v136 = vunpack.c.l.bf16 %v72
    %v137 = vunpack.c.l.bf16 %v73
    %v138 = vunpack.c.l.bf16 %v74
    %v139 = vunpack.c.l.bf16 %v75
    %v140 = vunpack.c.l.bf16 %v76
    %v141 = vunpack.c.l.bf16 %v77
    %v142 = vunpack.c.l.bf16 %v78
    %v143 = vunpack.c.l.bf16 %v79
    %v144 = vunpack.c.l.bf16 %v80
    %v145 = vunpack.c.l.bf16 %v81
    %v146 = vunpack.c.l.bf16 %v82
    %v147 = vunpack.c.l.bf16 %v83
    %v148 = vunpack.c.l.bf16 %v84
    %v149 = vunpack.c.l.bf16 %v85
    %v150 = vunpack.c.l.bf16 %v86
    %v151 = vunpack.c.l.bf16 %v87
    %v152 = vld [vmem:[%s1] sm:$0xf]
    %v154 = vunpack.c.l.s4 1966171168
    %v155 = vunpack.c.0.s8 %v154
    %v156 = vlaneseq
    %v157 = vshrl.u32 %v156, 7
    %v158 = vsub.s32 %v155, %v157
    %v159 = vrot.slane %v152, %v158
    %v160 = vcombine.high %v159, %v159
    %v162 = vunpack.c.l.s4 1966171168
    %v163 = vunpack.c.0.s8 %v162
    %v164 = vlaneseq
    %v165 = vshrl.u32 %v164, 7
    %v166 = vsub.s32 %v163, %v165
    %v167 = vrot.slane %v159, %v166
    %v169 = vunpack.c.l.s4 1966171168
    %v170 = vunpack.c.0.s8 %v169
    %v171 = vlaneseq
    %v172 = vshrl.u32 %v171, 7
    %v173 = vsub.s32 %v170, %v172
    %v174 = vrot.slane %v160, %v173
    %v175 = vcombine.high %v167, %v167
    %v176 = vcombine.high %v174, %v174
    %vm177 = vcmask 523264
    %v178 = vsel %vm177, %v88, -inf
    %v179 = vsel %vm177, %v89, -inf
    %v180 = vmax.f32 %v178, %v179
    %v181 = vsel %vm177, %v90, -inf
    %v182 = vmax.f32 %v180, %v181
    %v183 = vsel %vm177, %v91, -inf
    %v184 = vmax.f32 %v182, %v183
    %v185 = vsel %vm177, %v92, -inf
    %v186 = vmax.f32 %v184, %v185
    %v187 = vsel %vm177, %v93, -inf
    %v188 = vmax.f32 %v186, %v187
    %v189 = vsel %vm177, %v94, -inf
    %v190 = vmax.f32 %v188, %v189
    %v191 = vsel %vm177, %v95, -inf
    %v192 = vmax.f32 %v190, %v191
    %v193 = vsel %vm177, %v96, -inf
    %v194 = vmax.f32 %v192, %v193
    %v195 = vsel %vm177, %v97, -inf
    %v196 = vmax.f32 %v194, %v195
    %v197 = vsel %vm177, %v98, -inf
    %v198 = vmax.f32 %v196, %v197
    %v199 = vsel %vm177, %v99, -inf
    %v200 = vmax.f32 %v198, %v199
    %v201 = vsel %vm177, %v100, -inf
    %v202 = vmax.f32 %v200, %v201
    %v203 = vsel %vm177, %v101, -inf
    %v204 = vmax.f32 %v202, %v203
    %v205 = vsel %vm177, %v102, -inf
    %v206 = vmax.f32 %v204, %v205
    %v207 = vsel %vm177, %v103, -inf
    %v208 = vmax.f32 %v206, %v207
    %v209 = vrot.slane %v208, 4
    %v210 = vmax.f32 %v208, %v209
    %v211 = vrot.slane %v210, 2
    %v212 = vmax.f32 %v210, %v211
    %v213 = vrot.slane %v212, 1
    %v214 = vmax.f32 %v212, %v213
    %v215 = vsel %vm177, %v104, -inf
    %v216 = vsel %vm177, %v105, -inf
    %v217 = vmax.f32 %v215, %v216
    %v218 = vsel %vm177, %v106, -inf
    %v219 = vmax.f32 %v217, %v218
    %v220 = vsel %vm177, %v107, -inf
    %v221 = vmax.f32 %v219, %v220
    %v222 = vsel %vm177, %v108, -inf
    %v223 = vmax.f32 %v221, %v222
    %v224 = vsel %vm177, %v109, -inf
    %v225 = vmax.f32 %v223, %v224
    %v226 = vsel %vm177, %v110, -inf
    %v227 = vmax.f32 %v225, %v226
    %v228 = vsel %vm177, %v111, -inf
    %v229 = vmax.f32 %v227, %v228
    %v230 = vsel %vm177, %v112, -inf
    %v231 = vmax.f32 %v229, %v230
    %v232 = vsel %vm177, %v113, -inf
    %v233 = vmax.f32 %v231, %v232
    %v234 = vsel %vm177, %v114, -inf
    %v235 = vmax.f32 %v233, %v234
    %v236 = vsel %vm177, %v115, -inf
    %v237 = vmax.f32 %v235, %v236
    %v238 = vsel %vm177, %v116, -inf
    %v239 = vmax.f32 %v237, %v238
    %v240 = vsel %vm177, %v117, -inf
    %v241 = vmax.f32 %v239, %v240
    %v242 = vsel %vm177, %v118, -inf
    %v243 = vmax.f32 %v241, %v242
    %v244 = vsel %vm177, %v119, -inf
    %v245 = vmax.f32 %v243, %v244
    %v246 = vrot.slane %v245, 4
    %v247 = vmax.f32 %v245, %v246
    %v248 = vrot.slane %v247, 2
    %v249 = vmax.f32 %v247, %v248
    %v250 = vrot.slane %v249, 1
    %v251 = vmax.f32 %v249, %v250
    %v252 = vsel %vm177, %v120, -inf
    %v253 = vsel %vm177, %v121, -inf
    %v254 = vmax.f32 %v252, %v253
    %v255 = vsel %vm177, %v122, -inf
    %v256 = vmax.f32 %v254, %v255
    %v257 = vsel %vm177, %v123, -inf
    %v258 = vmax.f32 %v256, %v257
    %v259 = vsel %vm177, %v124, -inf
    %v260 = vmax.f32 %v258, %v259
    %v261 = vsel %vm177, %v125, -inf
    %v262 = vmax.f32 %v260, %v261
    %v263 = vsel %vm177, %v126, -inf
    %v264 = vmax.f32 %v262, %v263
    %v265 = vsel %vm177, %v127, -inf
    %v266 = vmax.f32 %v264, %v265
    %v267 = vsel %vm177, %v128, -inf
    %v268 = vmax.f32 %v266, %v267
    %v269 = vsel %vm177, %v129, -inf
    %v270 = vmax.f32 %v268, %v269
    %v271 = vsel %vm177, %v130, -inf
    %v272 = vmax.f32 %v270, %v271
    %v273 = vsel %vm177, %v131, -inf
    %v274 = vmax.f32 %v272, %v273
    %v275 = vsel %vm177, %v132, -inf
    %v276 = vmax.f32 %v274, %v275
    %v277 = vsel %vm177, %v133, -inf
    %v278 = vmax.f32 %v276, %v277
    %v279 = vsel %vm177, %v134, -inf
    %v280 = vmax.f32 %v278, %v279
    %v281 = vsel %vm177, %v135, -inf
    %v282 = vmax.f32 %v280, %v281
    %v283 = vrot.slane %v282, 4
    %v284 = vmax.f32 %v282, %v283
    %v285 = vrot.slane %v284, 2
    %v286 = vmax.f32 %v284, %v285
    %v287 = vrot.slane %v286, 1
    %v288 = vmax.f32 %v286, %v287
    %v289 = vsel %vm177, %v136, -inf
    %v290 = vsel %vm177, %v137, -inf
    %v291 = vmax.f32 %v289, %v290
    %v292 = vsel %vm177, %v138, -inf
    %v293 = vmax.f32 %v291, %v292
    %v294 = vsel %vm177, %v139, -inf
    %v295 = vmax.f32 %v293, %v294
    %v296 = vsel %vm177, %v140, -inf
    %v297 = vmax.f32 %v295, %v296
    %v298 = vsel %vm177, %v141, -inf
    %v299 = vmax.f32 %v297, %v298
    %v300 = vsel %vm177, %v142, -inf
    %v301 = vmax.f32 %v299, %v300
    %v302 = vsel %vm177, %v143, -inf
    %v303 = vmax.f32 %v301, %v302
    %v304 = vsel %vm177, %v144, -inf
    %v305 = vmax.f32 %v303, %v304
    %v306 = vsel %vm177, %v145, -inf
    %v307 = vmax.f32 %v305, %v306
    %v308 = vsel %vm177, %v146, -inf
    %v309 = vmax.f32 %v307, %v308
    %v310 = vsel %vm177, %v147, -inf
    %v311 = vmax.f32 %v309, %v310
    %v312 = vsel %vm177, %v148, -inf
    %v313 = vmax.f32 %v311, %v312
    %v314 = vsel %vm177, %v149, -inf
    %v315 = vmax.f32 %v313, %v314
    %v316 = vsel %vm177, %v150, -inf
    %v317 = vmax.f32 %v315, %v316
    %v318 = vsel %vm177, %v151, -inf
    %v319 = vmax.f32 %v317, %v318
    %v320 = vrot.slane %v319, 4
    %v321 = vmax.f32 %v319, %v320
    %v322 = vrot.slane %v321, 2
    %v323 = vmax.f32 %v321, %v322
    %v324 = vrot.slane %v323, 1
    %v325 = vmax.f32 %v323, %v324
    %v326 = vsub.f32 %v88, %v214
    %v327 = vsub.f32 %v89, %v214
    %v328 = vsub.f32 %v90, %v214
    %v329 = vsub.f32 %v91, %v214
    %v330 = vsub.f32 %v92, %v214
    %v331 = vsub.f32 %v93, %v214
    %v332 = vsub.f32 %v94, %v214
    %v333 = vsub.f32 %v95, %v214
    %v334 = vsub.f32 %v96, %v214
    %v335 = vsub.f32 %v97, %v214
    %v336 = vsub.f32 %v98, %v214
    %v337 = vsub.f32 %v99, %v214
    %v338 = vsub.f32 %v100, %v214
    %v339 = vsub.f32 %v101, %v214
    %v340 = vsub.f32 %v102, %v214
    %v341 = vsub.f32 %v103, %v214
    %v342 = vsub.f32 %v104, %v251
    %v343 = vsub.f32 %v105, %v251
    %v344 = vsub.f32 %v106, %v251
    %v345 = vsub.f32 %v107, %v251
    %v346 = vsub.f32 %v108, %v251
    %v347 = vsub.f32 %v109, %v251
    %v348 = vsub.f32 %v110, %v251
    %v349 = vsub.f32 %v111, %v251
    %v350 = vsub.f32 %v112, %v251
    %v351 = vsub.f32 %v113, %v251
    %v352 = vsub.f32 %v114, %v251
    %v353 = vsub.f32 %v115, %v251
    %v354 = vsub.f32 %v116, %v251
    %v355 = vsub.f32 %v117, %v251
    %v356 = vsub.f32 %v118, %v251
    %v357 = vsub.f32 %v119, %v251
    %v358 = vsub.f32 %v120, %v288
    %v359 = vsub.f32 %v121, %v288
    %v360 = vsub.f32 %v122, %v288
    %v361 = vsub.f32 %v123, %v288
    %v362 = vsub.f32 %v124, %v288
    %v363 = vsub.f32 %v125, %v288
    %v364 = vsub.f32 %v126, %v288
    %v365 = vsub.f32 %v127, %v288
    %v366 = vsub.f32 %v128, %v288
    %v367 = vsub.f32 %v129, %v288
    %v368 = vsub.f32 %v130, %v288
    %v369 = vsub.f32 %v131, %v288
    %v370 = vsub.f32 %v132, %v288
    %v371 = vsub.f32 %v133, %v288
    %v372 = vsub.f32 %v134, %v288
    %v373 = vsub.f32 %v135, %v288
    %v374 = vsub.f32 %v136, %v325
    %v375 = vsub.f32 %v137, %v325
    %v376 = vsub.f32 %v138, %v325
    %v377 = vsub.f32 %v139, %v325
    %v378 = vsub.f32 %v140, %v325
    %v379 = vsub.f32 %v141, %v325
    %v380 = vsub.f32 %v142, %v325
    %v381 = vsub.f32 %v143, %v325
    %v382 = vsub.f32 %v144, %v325
    %v383 = vsub.f32 %v145, %v325
    %v384 = vsub.f32 %v146, %v325
    %v385 = vsub.f32 %v147, %v325
    %v386 = vsub.f32 %v148, %v325
    %v387 = vsub.f32 %v149, %v325
    %v388 = vsub.f32 %v150, %v325
    %v389 = vsub.f32 %v151, %v325
    %v390 = vmul.f32 %v326, 1.442695
    %v391 = vpow.pop %v390
    %v392 = vmul.f32 %v327, 1.442695
    %v393 = vpow.pop %v392
    %v394 = vmul.f32 %v328, 1.442695
    %v395 = vpow.pop %v394
    %v396 = vmul.f32 %v329, 1.442695
    %v397 = vpow.pop %v396
    %v398 = vmul.f32 %v330, 1.442695
    %v399 = vpow.pop %v398
    %v400 = vmul.f32 %v331, 1.442695
    %v401 = vpow.pop %v400
    %v402 = vmul.f32 %v332, 1.442695
    %v403 = vpow.pop %v402
    %v404 = vmul.f32 %v333, 1.442695
    %v405 = vpow.pop %v404
    %v406 = vmul.f32 %v334, 1.442695
    %v407 = vpow.pop %v406
    %v408 = vmul.f32 %v335, 1.442695
    %v409 = vpow.pop %v408
    %v410 = vmul.f32 %v336, 1.442695
    %v411 = vpow.pop %v410
    %v412 = vmul.f32 %v337, 1.442695
    %v413 = vpow.pop %v412
    %v414 = vmul.f32 %v338, 1.442695
    %v415 = vpow.pop %v414
    %v416 = vmul.f32 %v339, 1.442695
    %v417 = vpow.pop %v416
    %v418 = vmul.f32 %v340, 1.442695
    %v419 = vpow.pop %v418
    %v420 = vmul.f32 %v341, 1.442695
    %v421 = vpow.pop %v420
    %v422 = vmul.f32 %v342, 1.442695
    %v423 = vpow.pop %v422
    %v424 = vmul.f32 %v343, 1.442695
    %v425 = vpow.pop %v424
    %v426 = vmul.f32 %v344, 1.442695
    %v427 = vpow.pop %v426
    %v428 = vmul.f32 %v345, 1.442695
    %v429 = vpow.pop %v428
    %v430 = vmul.f32 %v346, 1.442695
    %v431 = vpow.pop %v430
    %v432 = vmul.f32 %v347, 1.442695
    %v433 = vpow.pop %v432
    %v434 = vmul.f32 %v348, 1.442695
    %v435 = vpow.pop %v434
    %v436 = vmul.f32 %v349, 1.442695
    %v437 = vpow.pop %v436
    %v438 = vmul.f32 %v350, 1.442695
    %v439 = vpow.pop %v438
    %v440 = vmul.f32 %v351, 1.442695
    %v441 = vpow.pop %v440
    %v442 = vmul.f32 %v352, 1.442695
    %v443 = vpow.pop %v442
    %v444 = vmul.f32 %v353, 1.442695
    %v445 = vpow.pop %v444
    %v446 = vmul.f32 %v354, 1.442695
    %v447 = vpow.pop %v446
    %v448 = vmul.f32 %v355, 1.442695
    %v449 = vpow.pop %v448
    %v450 = vmul.f32 %v356, 1.442695
    %v451 = vpow.pop %v450
    %v452 = vmul.f32 %v357, 1.442695
    %v453 = vpow.pop %v452
    %v454 = vmul.f32 %v358, 1.442695
    %v455 = vpow.pop %v454
    %v456 = vmul.f32 %v359, 1.442695
    %v457 = vpow.pop %v456
    %v458 = vmul.f32 %v360, 1.442695
    %v459 = vpow.pop %v458
    %v460 = vmul.f32 %v361, 1.442695
    %v461 = vpow.pop %v460
    %v462 = vmul.f32 %v362, 1.442695
    %v463 = vpow.pop %v462
    %v464 = vmul.f32 %v363, 1.442695
    %v465 = vpow.pop %v464
    %v466 = vmul.f32 %v364, 1.442695
    %v467 = vpow.pop %v466
    %v468 = vmul.f32 %v365, 1.442695
    %v469 = vpow.pop %v468
    %v470 = vmul.f32 %v366, 1.442695
    %v471 = vpow.pop %v470
    %v472 = vmul.f32 %v367, 1.442695
    %v473 = vpow.pop %v472
    %v474 = vmul.f32 %v368, 1.442695
    %v475 = vpow.pop %v474
    %v476 = vmul.f32 %v369, 1.442695
    %v477 = vpow.pop %v476
    %v478 = vmul.f32 %v370, 1.442695
    %v479 = vpow.pop %v478
    %v480 = vmul.f32 %v371, 1.442695
    %v481 = vpow.pop %v480
    %v482 = vmul.f32 %v372, 1.442695
    %v483 = vpow.pop %v482
    %v484 = vmul.f32 %v373, 1.442695
    %v485 = vpow.pop %v484
    %v486 = vmul.f32 %v374, 1.442695
    %v487 = vpow.pop %v486
    %v488 = vmul.f32 %v375, 1.442695
    %v489 = vpow.pop %v488
    %v490 = vmul.f32 %v376, 1.442695
    %v491 = vpow.pop %v490
    %v492 = vmul.f32 %v377, 1.442695
    %v493 = vpow.pop %v492
    %v494 = vmul.f32 %v378, 1.442695
    %v495 = vpow.pop %v494
    %v496 = vmul.f32 %v379, 1.442695
    %v497 = vpow.pop %v496
    %v498 = vmul.f32 %v380, 1.442695
    %v499 = vpow.pop %v498
    %v500 = vmul.f32 %v381, 1.442695
    %v501 = vpow.pop %v500
    %v502 = vmul.f32 %v382, 1.442695
    %v503 = vpow.pop %v502
    %v504 = vmul.f32 %v383, 1.442695
    %v505 = vpow.pop %v504
    %v506 = vmul.f32 %v384, 1.442695
    %v507 = vpow.pop %v506
    %v508 = vmul.f32 %v385, 1.442695
    %v509 = vpow.pop %v508
    %v510 = vmul.f32 %v386, 1.442695
    %v511 = vpow.pop %v510
    %v512 = vmul.f32 %v387, 1.442695
    %v513 = vpow.pop %v512
    %v514 = vmul.f32 %v388, 1.442695
    %v515 = vpow.pop %v514
    %v516 = vmul.f32 %v389, 1.442695
    %v517 = vpow.pop %v516
    %v518 = vsel %vm177, %v391, 0.0
    %v519 = vsel %vm177, %v393, 0.0
    %v520 = vadd.f32 %v518, %v519
    %v521 = vsel %vm177, %v395, 0.0
    %v522 = vadd.f32 %v520, %v521
    %v523 = vsel %vm177, %v397, 0.0
    %v524 = vadd.f32 %v522, %v523
    %v525 = vsel %vm177, %v399, 0.0
    %v526 = vadd.f32 %v524, %v525
    %v527 = vsel %vm177, %v401, 0.0
    %v528 = vadd.f32 %v526, %v527
    %v529 = vsel %vm177, %v403, 0.0
    %v530 = vadd.f32 %v528, %v529
    %v531 = vsel %vm177, %v405, 0.0
    %v532 = vadd.f32 %v530, %v531
    %v533 = vsel %vm177, %v407, 0.0
    %v534 = vadd.f32 %v532, %v533
    %v535 = vsel %vm177, %v409, 0.0
    %v536 = vadd.f32 %v534, %v535
    %v537 = vsel %vm177, %v411, 0.0
    %v538 = vadd.f32 %v536, %v537
    %v539 = vsel %vm177, %v413, 0.0
    %v540 = vadd.f32 %v538, %v539
    %v541 = vsel %vm177, %v415, 0.0
    %v542 = vadd.f32 %v540, %v541
    %v543 = vsel %vm177, %v417, 0.0
    %v544 = vadd.f32 %v542, %v543
    %v545 = vsel %vm177, %v419, 0.0
    %v546 = vadd.f32 %v544, %v545
    %v547 = vsel %vm177, %v421, 0.0
    %v548 = vadd.f32 %v546, %v547
    %v549 = vrot.slane %v548, 4
    %v550 = vadd.f32 %v548, %v549
    %v551 = vrot.slane %v550, 2
    %v552 = vadd.f32 %v550, %v551
    %v553 = vrot.slane %v552, 1
    %v554 = vadd.f32 %v552, %v553
    %v555 = vsel %vm177, %v423, 0.0
    %v556 = vsel %vm177, %v425, 0.0
    %v557 = vadd.f32 %v555, %v556
    %v558 = vsel %vm177, %v427, 0.0
    %v559 = vadd.f32 %v557, %v558
    %v560 = vsel %vm177, %v429, 0.0
    %v561 = vadd.f32 %v559, %v560
    %v562 = vsel %vm177, %v431, 0.0
    %v563 = vadd.f32 %v561, %v562
    %v564 = vsel %vm177, %v433, 0.0
    %v565 = vadd.f32 %v563, %v564
    %v566 = vsel %vm177, %v435, 0.0
    %v567 = vadd.f32 %v565, %v566
    %v568 = vsel %vm177, %v437, 0.0
    %v569 = vadd.f32 %v567, %v568
    %v570 = vsel %vm177, %v439, 0.0
    %v571 = vadd.f32 %v569, %v570
    %v572 = vsel %vm177, %v441, 0.0
    %v573 = vadd.f32 %v571, %v572
    %v574 = vsel %vm177, %v443, 0.0
    %v575 = vadd.f32 %v573, %v574
    %v576 = vsel %vm177, %v445, 0.0
    %v577 = vadd.f32 %v575, %v576
    %v578 = vsel %vm177, %v447, 0.0
    %v579 = vadd.f32 %v577, %v578
    %v580 = vsel %vm177, %v449, 0.0
    %v581 = vadd.f32 %v579, %v580
    %v582 = vsel %vm177, %v451, 0.0
    %v583 = vadd.f32 %v581, %v582
    %v584 = vsel %vm177, %v453, 0.0
    %v585 = vadd.f32 %v583, %v584
    %v586 = vrot.slane %v585, 4
    %v587 = vadd.f32 %v585, %v586
    %v588 = vrot.slane %v587, 2
    %v589 = vadd.f32 %v587, %v588
    %v590 = vrot.slane %v589, 1
    %v591 = vadd.f32 %v589, %v590
    %v592 = vsel %vm177, %v455, 0.0
    %v593 = vsel %vm177, %v457, 0.0
    %v594 = vadd.f32 %v592, %v593
    %v595 = vsel %vm177, %v459, 0.0
    %v596 = vadd.f32 %v594, %v595
    %v597 = vsel %vm177, %v461, 0.0
    %v598 = vadd.f32 %v596, %v597
    %v599 = vsel %vm177, %v463, 0.0
    %v600 = vadd.f32 %v598, %v599
    %v601 = vsel %vm177, %v465, 0.0
    %v602 = vadd.f32 %v600, %v601
    %v603 = vsel %vm177, %v467, 0.0
    %v604 = vadd.f32 %v602, %v603
    %v605 = vsel %vm177, %v469, 0.0
    %v606 = vadd.f32 %v604, %v605
    %v607 = vsel %vm177, %v471, 0.0
    %v608 = vadd.f32 %v606, %v607
    %v609 = vsel %vm177, %v473, 0.0
    %v610 = vadd.f32 %v608, %v609
    %v611 = vsel %vm177, %v475, 0.0
    %v612 = vadd.f32 %v610, %v611
    %v613 = vsel %vm177, %v477, 0.0
    %v614 = vadd.f32 %v612, %v613
    %v615 = vsel %vm177, %v479, 0.0
    %v616 = vadd.f32 %v614, %v615
    %v617 = vsel %vm177, %v481, 0.0
    %v618 = vadd.f32 %v616, %v617
    %v619 = vsel %vm177, %v483, 0.0
    %v620 = vadd.f32 %v618, %v619
    %v621 = vsel %vm177, %v485, 0.0
    %v622 = vadd.f32 %v620, %v621
    %v623 = vrot.slane %v622, 4
    %v624 = vadd.f32 %v622, %v623
    %v625 = vrot.slane %v624, 2
    %v626 = vadd.f32 %v624, %v625
    %v627 = vrot.slane %v626, 1
    %v628 = vadd.f32 %v626, %v627
    %v629 = vsel %vm177, %v487, 0.0
    %v630 = vsel %vm177, %v489, 0.0
    %v631 = vadd.f32 %v629, %v630
    %v632 = vsel %vm177, %v491, 0.0
    %v633 = vadd.f32 %v631, %v632
    %v634 = vsel %vm177, %v493, 0.0
    %v635 = vadd.f32 %v633, %v634
    %v636 = vsel %vm177, %v495, 0.0
    %v637 = vadd.f32 %v635, %v636
    %v638 = vsel %vm177, %v497, 0.0
    %v639 = vadd.f32 %v637, %v638
    %v640 = vsel %vm177, %v499, 0.0
    %v641 = vadd.f32 %v639, %v640
    %v642 = vsel %vm177, %v501, 0.0
    %v643 = vadd.f32 %v641, %v642
    %v644 = vsel %vm177, %v503, 0.0
    %v645 = vadd.f32 %v643, %v644
    %v646 = vsel %vm177, %v505, 0.0
    %v647 = vadd.f32 %v645, %v646
    %v648 = vsel %vm177, %v507, 0.0
    %v649 = vadd.f32 %v647, %v648
    %v650 = vsel %vm177, %v509, 0.0
    %v651 = vadd.f32 %v649, %v650
    %v652 = vsel %vm177, %v511, 0.0
    %v653 = vadd.f32 %v651, %v652
    %v654 = vsel %vm177, %v513, 0.0
    %v655 = vadd.f32 %v653, %v654
    %v656 = vsel %vm177, %v515, 0.0
    %v657 = vadd.f32 %v655, %v656
    %v658 = vsel %vm177, %v517, 0.0
    %v659 = vadd.f32 %v657, %v658
    %v660 = vrot.slane %v659, 4
    %v661 = vadd.f32 %v659, %v660
    %v662 = vrot.slane %v661, 2
    %v663 = vadd.f32 %v661, %v662
    %v664 = vrot.slane %v663, 1
    %v665 = vadd.f32 %v663, %v664
    %v666 = vlog2.pop %v554
    %v667 = vmul.f32 %v666, 0.6931472
    %v668 = vlog2.pop %v591
    %v669 = vmul.f32 %v668, 0.6931472
    %v670 = vlog2.pop %v628
    %v671 = vmul.f32 %v670, 0.6931472
    %v672 = vlog2.pop %v665
    %v673 = vmul.f32 %v672, 0.6931472
    %v674 = vadd.f32 %v667, %v214
    %v675 = vadd.f32 %v669, %v251
    %v676 = vadd.f32 %v671, %v288
    %v677 = vadd.f32 %v673, %v325
    %v678 = vlaneseq
    %v679 = vshrl.u32 %v678, 7
    %v680 = vadd.s32 %v679, 8
    %v681 = vadd.s32 %v679, 16
    %v682 = vadd.s32 %v679, 24
    %v683 = vadd.s32 %v679, 32
    %v684 = vadd.s32 %v679, 40
    %v685 = vadd.s32 %v679, 48
    %v686 = vadd.s32 %v679, 56
    %v687 = vadd.s32 %v679, 64
    %v688 = vadd.s32 %v679, 72
    %v689 = vadd.s32 %v679, 80
    %v690 = vadd.s32 %v679, 88
    %v691 = vadd.s32 %v679, 96
    %v692 = vadd.s32 %v679, 104
    %v693 = vadd.s32 %v679, 112
    %v694 = vadd.s32 %v679, 120
    %v695 = vlaneseq
    %v696 = vshrl.u32 %v695, 7
    %v697 = vsub.s32 0, %v696
    %v698 = vrot.slane %v167, %v697
    %v699 = vlaneseq
    %v700 = vshrl.u32 %v699, 7
    %v701 = vsub.s32 0, %v700
    %v702 = vrot.slane %v174, %v701
    %v703 = vlaneseq
    %v704 = vshrl.u32 %v703, 7
    %v705 = vsub.s32 0, %v704
    %v706 = vrot.slane %v175, %v705
    %v707 = vlaneseq
    %v708 = vshrl.u32 %v707, 7
    %v709 = vsub.s32 0, %v708
    %v710 = vrot.slane %v176, %v709
    %vm711 = vcmp.eq.s32.totalorder %v679, %v698
    %vm712 = vcmp.eq.s32.totalorder %v680, %v698
    %vm713 = vcmp.eq.s32.totalorder %v681, %v698
    %vm714 = vcmp.eq.s32.totalorder %v682, %v698
    %vm715 = vcmp.eq.s32.totalorder %v683, %v698
    %vm716 = vcmp.eq.s32.totalorder %v684, %v698
    %vm717 = vcmp.eq.s32.totalorder %v685, %v698
    %vm718 = vcmp.eq.s32.totalorder %v686, %v698
    %vm719 = vcmp.eq.s32.totalorder %v687, %v698
    %vm720 = vcmp.eq.s32.totalorder %v688, %v698
    %vm721 = vcmp.eq.s32.totalorder %v689, %v698
    %vm722 = vcmp.eq.s32.totalorder %v690, %v698
    %vm723 = vcmp.eq.s32.totalorder %v691, %v698
    %vm724 = vcmp.eq.s32.totalorder %v692, %v698
    %vm725 = vcmp.eq.s32.totalorder %v693, %v698
    %vm726 = vcmp.eq.s32.totalorder %v694, %v698
    %vm727 = vcmp.eq.s32.totalorder %v679, %v702
    %vm728 = vcmp.eq.s32.totalorder %v680, %v702
    %vm729 = vcmp.eq.s32.totalorder %v681, %v702
    %vm730 = vcmp.eq.s32.totalorder %v682, %v702
    %vm731 = vcmp.eq.s32.totalorder %v683, %v702
    %vm732 = vcmp.eq.s32.totalorder %v684, %v702
    %vm733 = vcmp.eq.s32.totalorder %v685, %v702
    %vm734 = vcmp.eq.s32.totalorder %v686, %v702
    %vm735 = vcmp.eq.s32.totalorder %v687, %v702
    %vm736 = vcmp.eq.s32.totalorder %v688, %v702
    %vm737 = vcmp.eq.s32.totalorder %v689, %v702
    %vm738 = vcmp.eq.s32.totalorder %v690, %v702
    %vm739 = vcmp.eq.s32.totalorder %v691, %v702
    %vm740 = vcmp.eq.s32.totalorder %v692, %v702
    %vm741 = vcmp.eq.s32.totalorder %v693, %v702
    %vm742 = vcmp.eq.s32.totalorder %v694, %v702
    %vm743 = vcmp.eq.s32.totalorder %v679, %v706
    %vm744 = vcmp.eq.s32.totalorder %v680, %v706
    %vm745 = vcmp.eq.s32.totalorder %v681, %v706
    %vm746 = vcmp.eq.s32.totalorder %v682, %v706
    %vm747 = vcmp.eq.s32.totalorder %v683, %v706
    %vm748 = vcmp.eq.s32.totalorder %v684, %v706
    %vm749 = vcmp.eq.s32.totalorder %v685, %v706
    %vm750 = vcmp.eq.s32.totalorder %v686, %v706
    %vm751 = vcmp.eq.s32.totalorder %v687, %v706
    %vm752 = vcmp.eq.s32.totalorder %v688, %v706
    %vm753 = vcmp.eq.s32.totalorder %v689, %v706
    %vm754 = vcmp.eq.s32.totalorder %v690, %v706
    %vm755 = vcmp.eq.s32.totalorder %v691, %v706
    %vm756 = vcmp.eq.s32.totalorder %v692, %v706
    %vm757 = vcmp.eq.s32.totalorder %v693, %v706
    %vm758 = vcmp.eq.s32.totalorder %v694, %v706
    %vm759 = vcmp.eq.s32.totalorder %v679, %v710
    %vm760 = vcmp.eq.s32.totalorder %v680, %v710
    %vm761 = vcmp.eq.s32.totalorder %v681, %v710
    %vm762 = vcmp.eq.s32.totalorder %v682, %v710
    %vm763 = vcmp.eq.s32.totalorder %v683, %v710
    %vm764 = vcmp.eq.s32.totalorder %v684, %v710
    %vm765 = vcmp.eq.s32.totalorder %v685, %v710
    %vm766 = vcmp.eq.s32.totalorder %v686, %v710
    %vm767 = vcmp.eq.s32.totalorder %v687, %v710
    %vm768 = vcmp.eq.s32.totalorder %v688, %v710
    %vm769 = vcmp.eq.s32.totalorder %v689, %v710
    %vm770 = vcmp.eq.s32.totalorder %v690, %v710
    %vm771 = vcmp.eq.s32.totalorder %v691, %v710
    %vm772 = vcmp.eq.s32.totalorder %v692, %v710
    %vm773 = vcmp.eq.s32.totalorder %v693, %v710
    %vm774 = vcmp.eq.s32.totalorder %v694, %v710
    %v775 = vsel %vm711, %v88, 0.0
    %v776 = vsel %vm712, %v89, 0.0
    %v777 = vsel %vm713, %v90, 0.0
    %v778 = vsel %vm714, %v91, 0.0
    %v779 = vsel %vm715, %v92, 0.0
    %v780 = vsel %vm716, %v93, 0.0
    %v781 = vsel %vm717, %v94, 0.0
    %v782 = vsel %vm718, %v95, 0.0
    %v783 = vsel %vm719, %v96, 0.0
    %v784 = vsel %vm720, %v97, 0.0
    %v785 = vsel %vm721, %v98, 0.0
    %v786 = vsel %vm722, %v99, 0.0
    %v787 = vsel %vm723, %v100, 0.0
    %v788 = vsel %vm724, %v101, 0.0
    %v789 = vsel %vm725, %v102, 0.0
    %v790 = vsel %vm726, %v103, 0.0
    %v791 = vsel %vm727, %v104, 0.0
    %v792 = vsel %vm728, %v105, 0.0
    %v793 = vsel %vm729, %v106, 0.0
    %v794 = vsel %vm730, %v107, 0.0
    %v795 = vsel %vm731, %v108, 0.0
    %v796 = vsel %vm732, %v109, 0.0
    %v797 = vsel %vm733, %v110, 0.0
    %v798 = vsel %vm734, %v111, 0.0
    %v799 = vsel %vm735, %v112, 0.0
    %v800 = vsel %vm736, %v113, 0.0
    %v801 = vsel %vm737, %v114, 0.0
    %v802 = vsel %vm738, %v115, 0.0
    %v803 = vsel %vm739, %v116, 0.0
    %v804 = vsel %vm740, %v117, 0.0
    %v805 = vsel %vm741, %v118, 0.0
    %v806 = vsel %vm742, %v119, 0.0
    %v807 = vsel %vm743, %v120, 0.0
    %v808 = vsel %vm744, %v121, 0.0
    %v809 = vsel %vm745, %v122, 0.0
    %v810 = vsel %vm746, %v123, 0.0
    %v811 = vsel %vm747, %v124, 0.0
    %v812 = vsel %vm748, %v125, 0.0
    %v813 = vsel %vm749, %v126, 0.0
    %v814 = vsel %vm750, %v127, 0.0
    %v815 = vsel %vm751, %v128, 0.0
    %v816 = vsel %vm752, %v129, 0.0
    %v817 = vsel %vm753, %v130, 0.0
    %v818 = vsel %vm754, %v131, 0.0
    %v819 = vsel %vm755, %v132, 0.0
    %v820 = vsel %vm756, %v133, 0.0
    %v821 = vsel %vm757, %v134, 0.0
    %v822 = vsel %vm758, %v135, 0.0
    %v823 = vsel %vm759, %v136, 0.0
    %v824 = vsel %vm760, %v137, 0.0
    %v825 = vsel %vm761, %v138, 0.0
    %v826 = vsel %vm762, %v139, 0.0
    %v827 = vsel %vm763, %v140, 0.0
    %v828 = vsel %vm764, %v141, 0.0
    %v829 = vsel %vm765, %v142, 0.0
    %v830 = vsel %vm766, %v143, 0.0
    %v831 = vsel %vm767, %v144, 0.0
    %v832 = vsel %vm768, %v145, 0.0
    %v833 = vsel %vm769, %v146, 0.0
    %v834 = vsel %vm770, %v147, 0.0
    %v835 = vsel %vm771, %v148, 0.0
    %v836 = vsel %vm772, %v149, 0.0
    %v837 = vsel %vm773, %v150, 0.0
    %v838 = vsel %vm774, %v151, 0.0
    %v839 = vsel %vm177, %v775, 0.0
    %v840 = vsel %vm177, %v776, 0.0
    %v841 = vadd.f32 %v839, %v840
    %v842 = vsel %vm177, %v777, 0.0
    %v843 = vadd.f32 %v841, %v842
    %v844 = vsel %vm177, %v778, 0.0
    %v845 = vadd.f32 %v843, %v844
    %v846 = vsel %vm177, %v779, 0.0
    %v847 = vadd.f32 %v845, %v846
    %v848 = vsel %vm177, %v780, 0.0
    %v849 = vadd.f32 %v847, %v848
    %v850 = vsel %vm177, %v781, 0.0
    %v851 = vadd.f32 %v849, %v850
    %v852 = vsel %vm177, %v782, 0.0
    %v853 = vadd.f32 %v851, %v852
    %v854 = vsel %vm177, %v783, 0.0
    %v855 = vadd.f32 %v853, %v854
    %v856 = vsel %vm177, %v784, 0.0
    %v857 = vadd.f32 %v855, %v856
    %v858 = vsel %vm177, %v785, 0.0
    %v859 = vadd.f32 %v857, %v858
    %v860 = vsel %vm177, %v786, 0.0
    %v861 = vadd.f32 %v859, %v860
    %v862 = vsel %vm177, %v787, 0.0
    %v863 = vadd.f32 %v861, %v862
    %v864 = vsel %vm177, %v788, 0.0
    %v865 = vadd.f32 %v863, %v864
    %v866 = vsel %vm177, %v789, 0.0
    %v867 = vadd.f32 %v865, %v866
    %v868 = vsel %vm177, %v790, 0.0
    %v869 = vadd.f32 %v867, %v868
    %v870 = vrot.slane %v869, 4
    %v871 = vadd.f32 %v869, %v870
    %v872 = vrot.slane %v871, 2
    %v873 = vadd.f32 %v871, %v872
    %v874 = vrot.slane %v873, 1
    %v875 = vadd.f32 %v873, %v874
    %v876 = vsel %vm177, %v791, 0.0
    %v877 = vsel %vm177, %v792, 0.0
    %v878 = vadd.f32 %v876, %v877
    %v879 = vsel %vm177, %v793, 0.0
    %v880 = vadd.f32 %v878, %v879
    %v881 = vsel %vm177, %v794, 0.0
    %v882 = vadd.f32 %v880, %v881
    %v883 = vsel %vm177, %v795, 0.0
    %v884 = vadd.f32 %v882, %v883
    %v885 = vsel %vm177, %v796, 0.0
    %v886 = vadd.f32 %v884, %v885
    %v887 = vsel %vm177, %v797, 0.0
    %v888 = vadd.f32 %v886, %v887
    %v889 = vsel %vm177, %v798, 0.0
    %v890 = vadd.f32 %v888, %v889
    %v891 = vsel %vm177, %v799, 0.0
    %v892 = vadd.f32 %v890, %v891
    %v893 = vsel %vm177, %v800, 0.0
    %v894 = vadd.f32 %v892, %v893
    %v895 = vsel %vm177, %v801, 0.0
    %v896 = vadd.f32 %v894, %v895
    %v897 = vsel %vm177, %v802, 0.0
    %v898 = vadd.f32 %v896, %v897
    %v899 = vsel %vm177, %v803, 0.0
    %v900 = vadd.f32 %v898, %v899
    %v901 = vsel %vm177, %v804, 0.0
    %v902 = vadd.f32 %v900, %v901
    %v903 = vsel %vm177, %v805, 0.0
    %v904 = vadd.f32 %v902, %v903
    %v905 = vsel %vm177, %v806, 0.0
    %v906 = vadd.f32 %v904, %v905
    %v907 = vrot.slane %v906, 4
    %v908 = vadd.f32 %v906, %v907
    %v909 = vrot.slane %v908, 2
    %v910 = vadd.f32 %v908, %v909
    %v911 = vrot.slane %v910, 1
    %v912 = vadd.f32 %v910, %v911
    %v913 = vsel %vm177, %v807, 0.0
    %v914 = vsel %vm177, %v808, 0.0
    %v915 = vadd.f32 %v913, %v914
    %v916 = vsel %vm177, %v809, 0.0
    %v917 = vadd.f32 %v915, %v916
    %v918 = vsel %vm177, %v810, 0.0
    %v919 = vadd.f32 %v917, %v918
    %v920 = vsel %vm177, %v811, 0.0
    %v921 = vadd.f32 %v919, %v920
    %v922 = vsel %vm177, %v812, 0.0
    %v923 = vadd.f32 %v921, %v922
    %v924 = vsel %vm177, %v813, 0.0
    %v925 = vadd.f32 %v923, %v924
    %v926 = vsel %vm177, %v814, 0.0
    %v927 = vadd.f32 %v925, %v926
    %v928 = vsel %vm177, %v815, 0.0
    %v929 = vadd.f32 %v927, %v928
    %v930 = vsel %vm177, %v816, 0.0
    %v931 = vadd.f32 %v929, %v930
    %v932 = vsel %vm177, %v817, 0.0
    %v933 = vadd.f32 %v931, %v932
    %v934 = vsel %vm177, %v818, 0.0
    %v935 = vadd.f32 %v933, %v934
    %v936 = vsel %vm177, %v819, 0.0
    %v937 = vadd.f32 %v935, %v936
    %v938 = vsel %vm177, %v820, 0.0
    %v939 = vadd.f32 %v937, %v938
    %v940 = vsel %vm177, %v821, 0.0
    %v941 = vadd.f32 %v939, %v940
    %v942 = vsel %vm177, %v822, 0.0
    %v943 = vadd.f32 %v941, %v942
    %v944 = vrot.slane %v943, 4
    %v945 = vadd.f32 %v943, %v944
    %v946 = vrot.slane %v945, 2
    %v947 = vadd.f32 %v945, %v946
    %v948 = vrot.slane %v947, 1
    %v949 = vadd.f32 %v947, %v948
    %v950 = vsel %vm177, %v823, 0.0
    %v951 = vsel %vm177, %v824, 0.0
    %v952 = vadd.f32 %v950, %v951
    %v953 = vsel %vm177, %v825, 0.0
    %v954 = vadd.f32 %v952, %v953
    %v955 = vsel %vm177, %v826, 0.0
    %v956 = vadd.f32 %v954, %v955
    %v957 = vsel %vm177, %v827, 0.0
    %v958 = vadd.f32 %v956, %v957
    %v959 = vsel %vm177, %v828, 0.0
    %v960 = vadd.f32 %v958, %v959
    %v961 = vsel %vm177, %v829, 0.0
    %v962 = vadd.f32 %v960, %v961
    %v963 = vsel %vm177, %v830, 0.0
    %v964 = vadd.f32 %v962, %v963
    %v965 = vsel %vm177, %v831, 0.0
    %v966 = vadd.f32 %v964, %v965
    %v967 = vsel %vm177, %v832, 0.0
    %v968 = vadd.f32 %v966, %v967
    %v969 = vsel %vm177, %v833, 0.0
    %v970 = vadd.f32 %v968, %v969
    %v971 = vsel %vm177, %v834, 0.0
    %v972 = vadd.f32 %v970, %v971
    %v973 = vsel %vm177, %v835, 0.0
    %v974 = vadd.f32 %v972, %v973
    %v975 = vsel %vm177, %v836, 0.0
    %v976 = vadd.f32 %v974, %v975
    %v977 = vsel %vm177, %v837, 0.0
    %v978 = vadd.f32 %v976, %v977
    %v979 = vsel %vm177, %v838, 0.0
    %v980 = vadd.f32 %v978, %v979
    %v981 = vrot.slane %v980, 4
    %v982 = vadd.f32 %v980, %v981
    %v983 = vrot.slane %v982, 2
    %v984 = vadd.f32 %v982, %v983
    %v985 = vrot.slane %v984, 1
    %v986 = vadd.f32 %v984, %v985
    %vm987 = vcmp.ge.s32.totalorder %v167, 0
    %vm988 = vcmp.ge.s32.totalorder %v174, 0
    %vm989 = vcmp.ge.s32.totalorder %v175, 0
    %vm990 = vcmp.ge.s32.totalorder %v176, 0
    %v991 = vsub.f32 %v674, %v875
    %v992 = vsub.f32 %v675, %v912
    %v993 = vsub.f32 %v676, %v949
    %v994 = vsub.f32 %v677, %v986
    %v995 = vsel %vm987, %v991, 0.0
    %v996 = vsel %vm988, %v992, 0.0
    %v997 = vsel %vm989, %v993, 0.0
    %v998 = vsel %vm990, %v994, 0.0
    %vm999 = vcmask 516096
    %v1000 = vsel %vm999, %v995, 0.0
    %1001 = vadd.xlane.f32.xlu0 %v1000
    %v1002 = vpop.xlane.xlu0 %1001
    %v1003 = vsel %vm999, %v996, 0.0
    %1004 = vadd.xlane.f32.xlu0 %v1003
    %v1005 = vpop.xlane.xlu0 %1004
    %v1006 = vsel %vm999, %v997, 0.0
    %1007 = vadd.xlane.f32.xlu0 %v1006
    %v1008 = vpop.xlane.xlu0 %1007
    %v1009 = vsel %vm999, %v998, 0.0
    %1010 = vadd.xlane.f32.xlu0 %v1009
    %v1011 = vpop.xlane.xlu0 %1010
    %vm1012 = vcmask 1040384
    %v1013 = vsel %vm1012, %v1002, 0.0
    %v1014 = vsel %vm1012, %v1005, 0.0
    %v1015 = vadd.f32 %v1013, %v1014
    %v1016 = vsel %vm1012, %v1008, 0.0
    %v1017 = vadd.f32 %v1015, %v1016
    %v1018 = vsel %vm1012, %v1011, 0.0
    %v1019 = vadd.f32 %v1017, %v1018
    %v1020 = vsel %vm987, 1, 0
    %v1021 = vsel %vm988, 1, 0
    %v1022 = vsel %vm989, 1, 0
    %v1023 = vsel %vm990, 1, 0
    %v1024 = vcvt.s32.f32 %v1020
    %v1025 = vcvt.s32.f32 %v1021
    %v1026 = vcvt.s32.f32 %v1022
    %v1027 = vcvt.s32.f32 %v1023
    %v1028 = vsel %vm999, %v1024, 0.0
    %1029 = vadd.xlane.f32.xlu0 %v1028
    %v1030 = vpop.xlane.xlu0 %1029
    %v1031 = vsel %vm999, %v1025, 0.0
    %1032 = vadd.xlane.f32.xlu0 %v1031
    %v1033 = vpop.xlane.xlu0 %1032
    %v1034 = vsel %vm999, %v1026, 0.0
    %1035 = vadd.xlane.f32.xlu0 %v1034
    %v1036 = vpop.xlane.xlu0 %1035
    %v1037 = vsel %vm999, %v1027, 0.0
    %1038 = vadd.xlane.f32.xlu0 %v1037
    %v1039 = vpop.xlane.xlu0 %1038
    %v1040 = vsel %vm1012, %v1030, 0.0
    %v1041 = vsel %vm1012, %v1033, 0.0
    %v1042 = vadd.f32 %v1040, %v1041
    %v1043 = vsel %vm1012, %v1036, 0.0
    %v1044 = vadd.f32 %v1042, %v1043
    %v1045 = vsel %vm1012, %v1039, 0.0
    %v1046 = vadd.f32 %v1044, %v1045
    %v1047 = vld [vmem:[#allocation2] sm:$0x1]
    %v1048 = vadd.f32 %v1047, %v1019
    %vm1049 = vcmask 0
    %1050 = vst.msk [vmem:[#allocation2] sm:$0x1] %vm1049, %v1048
    %v1051 = vld [vmem:[#allocation4] sm:$0x1]
    %v1052 = vadd.f32 %v1051, %v1046
    %1053 = vst.msk [vmem:[#allocation4] sm:$0x1] %vm1049, %v1052
    // Predicated region
    $region14: #{tpu_custom_call.1} parent=1 // pred_check
      _
    $region15: #{tpu_custom_call.1} parent=1 // pred_check_branch
      %1055 = sbr.rel (0) target = $region17
    $region16: #{tpu_custom_call.1} parent=1 // pred_region
      %s1057 = ssub.s32 16, 16
      %1058 = vsyncadd [#allocation3], %s1057
      %s1060 = sshll.u32 [#allocation2], 4
      %s1061 = int_to_ptr.vmem [resolvable:$true] %s1060
      %1063 = dma.vmem_to_hbm [thread:$0]  %s1061, 16, %s2, [#allocation3]
    $region17: #{tpu_custom_call.1} parent=1 // pred_fallthru
      _
    // Predicated region
    $region18: #{tpu_custom_call.1} parent=1 // pred_check
      _
    $region19: #{tpu_custom_call.1} parent=1 // pred_check_branch
      %1065 = sbr.rel (0) target = $region21
    $region20: #{tpu_custom_call.1} parent=1 // pred_region
      %s1067 = ssub.s32 16, 16
      %1068 = vsyncadd [#allocation5], %s1067
      %s1070 = sshll.u32 [#allocation4], 4
      %s1071 = int_to_ptr.vmem [resolvable:$true] %s1070
      %1073 = dma.vmem_to_hbm [thread:$0]  %s1071, 16, %s3, [#allocation5]
    $region21: #{tpu_custom_call.1} parent=1 // pred_fallthru
      _
    // Predicated region
    $region22: #{tpu_custom_call.1} parent=1 // pred_check
      _
    $region23: #{tpu_custom_call.1} parent=1 // pred_check_branch
      %1075 = sbr.rel (0) target = $region25
    $region24: #{tpu_custom_call.1} parent=1 // pred_region
      %1076 = dma.done [#allocation3], 16
    $region25: #{tpu_custom_call.1} parent=1 // pred_fallthru
      _
    // Predicated region
    $region26: #{tpu_custom_call.1} parent=1 // pred_check
      _
    $region27: #{tpu_custom_call.1} parent=1 // pred_check_branch
      %1078 = sbr.rel (0) target = $region29
    $region28: #{tpu_custom_call.1} parent=1 // pred_region
      %1079 = dma.done [#allocation5], 16
    $region29: #{tpu_custom_call.1} parent=1 // pred_fallthru
      _
    %1080 = vsyncpa [#allocation3], 1
    %1081 = vsyncpa [#allocation5], 1

</llo_original>
